<compile_context>
chip_gen: v6e
topology: v6e:2x2x1
jax: 0.10.0
libtpu: 0.0.40
codegen_flags: <defaults>
</compile_context>

<pallas_src>
import functools

import jax
import jax.numpy as jnp
from jax.experimental import pallas as pl
from jax.experimental.pallas import tpu as pltpu


# geo_actvn constants (matching the PyTorch forward call)
RADIUS_MIN = 0.001
RADIUS_MAX = 0.015
RADIUS_SHIFT = 0.0
DENSITY_SHIFT = 0.0


def _geo_affine_kernel(x_ref, wt_ref, b_ref, scale_ref, off_ref, out_ref):
    """out[C, tile] = scale * sigmoid(Wt @ x^T + b) + off   (per-row affine).

    x_ref     : (tile, L)  input rows in their native dtype (f32 / bf16)
    wt_ref    : (C, L)     folded + lane-packed weights, transposed, bf16
    b_ref     : (C, 1)     folded bias (+ geo_actvn shifts), f32
    scale_ref : (C, 1)     per-row scale  (r rows: RADIUS_MAX-RADIUS_MIN, dens rows: 1)
    off_ref   : (C, 1)     per-row offset (r rows: RADIUS_MIN,            dens rows: 0)
    out_ref   : (C, tile)  lane-dense merged output (r / dens interleaved rows)
    """
    # Cast to the MXU-native dtype in-kernel: pure VPU work hidden under the
    # x-block DMA (no extra HBM pass in the wrapper).
    x = x_ref[...].astype(wt_ref.dtype)
    logits = jax.lax.dot_general(
        wt_ref[...], x,
        dimension_numbers=(((1,), (1,)), ((), ())),
        preferred_element_type=jnp.float32,
    )
    logits = logits + b_ref[...]                       # (C, 1) lane-broadcast, f32
    out_ref[...] = (jax.nn.sigmoid(logits) * scale_ref[...]
                    + off_ref[...]).astype(out_ref.dtype)


def _round_up(a, b):
    return (a + b - 1) // b * b


def _fold_params(params):
    """Fold the activation-free Linear stack into a single affine map (f32, exact)."""
    w_eff, b_eff = params[0]
    w_eff = w_eff.astype(jnp.float32)
    b_eff = b_eff.astype(jnp.float32)
    for w, b in params[1:]:
        b_eff = b_eff @ w.astype(jnp.float32) + b.astype(jnp.float32)
        w_eff = w_eff @ w.astype(jnp.float32)
    return w_eff, b_eff                                # (F, 2), (1, 2)


def _pack_affine(w_eff, b_eff, k, compute_dtype):
    """Transposed, lane-packed weight / bias / scale / offset tensors.

    With k points packed per (k*F)-lane row, the weight is block-diagonal:
        wt[2*i + c, i*F:(i+1)*F] = w_eff[:, c]
    so  logits[2*i + c, j] = <w_eff[:, c], x[j*k + i, :]>.
    """
    F = w_eff.shape[0]
    eye = jnp.eye(k, dtype=jnp.float32)
    wt = (eye[:, None, :, None] * w_eff.T[None, :, None, :]).reshape(2 * k, k * F)
    chan_b = b_eff.reshape(2) + jnp.array([RADIUS_SHIFT, DENSITY_SHIFT], jnp.float32)
    b = jnp.tile(chan_b, k).reshape(2 * k, 1)
    scale = jnp.tile(jnp.array([RADIUS_MAX - RADIUS_MIN, 1.0], jnp.float32), k).reshape(2 * k, 1)
    off = jnp.tile(jnp.array([RADIUS_MIN, 0.0], jnp.float32), k).reshape(2 * k, 1)
    return wt.astype(compute_dtype), b, scale, off


def _pick_rows(n_rows, row_hbm_bytes, row_vmem_bytes,
               target_block_bytes=8 << 20, vmem_buf_bytes=8 << 20):
    """Rows per grid block: sized by bytes (~8 MiB of HBM per step amortizes the
    ~0.35us/step pipeline overhead) and capped by the per-buffer VMEM budget
    (which counts lane padding) so double-buffering fits every generation."""
    t = min(target_block_bytes // row_hbm_bytes, vmem_buf_bytes // row_vmem_bytes)
    t = max(128, t // 128 * 128)
    return n_rows if t >= n_rows else t


@functools.partial(jax.jit, static_argnames=("tile_rows",))
def geo_linear_forward(feat, params, *, tile_rows=None):
    """feat: [..., F]; params: list of (w, b) with w (in, out), b (1, out).
    Returns (r, dens), each [..., 1] float32 (same semantics as GeoLinear.forward)."""
    F = feat.shape[-1]
    lead = feat.shape[:-1]
    x = feat.reshape(-1, F)                 # free reshape, no HBM pass
    n = x.shape[0]
    compute_dtype = jnp.bfloat16

    w_eff, b_eff = _fold_params(params)

    # Lane packing: view k consecutive points as one (k*F)-lane row (free,
    # contiguous reshape).  Pick the largest k with k*F <= 128 dividing n.
    k = 1
    if F <= 128:
        for cand in range(128 // F, 0, -1):
            if n % cand == 0:
                k = cand
                break
    L = k * F
    n_rows = n // k
    x_rows = x.reshape(n_rows, L)
    C = 2 * k

    wt, b, scale, off = _pack_affine(w_eff, b_eff, k, compute_dtype)

    itemsize = jnp.dtype(x.dtype).itemsize
    row_hbm = L * itemsize
    row_vmem = _round_up(L, 128) * itemsize          # VMEM lane padding (if L < 128)
    if tile_rows is None:
        tile = _pick_rows(n_rows, row_hbm, row_vmem)
    else:
        tile = min(max(128, _round_up(tile_rows, 128)), n_rows)
    grid = (pl.cdiv(n_rows, tile),)                  # ragged edge handled by masking

    # Explicit VMEM sizing: 2x-buffered x + out blocks, plus small params.
    x_blk = tile * row_vmem
    out_blk = _round_up(C, 8) * _round_up(tile, 128) * 4
    vmem_limit = int(min(max(2 * (x_blk + out_blk) + (4 << 20), 16 << 20), 48 << 20))

    cost = pl.CostEstimate(
        flops=2 * n_rows * L * C,
        transcendentals=n_rows * C,
        bytes_accessed=n_rows * (row_hbm + C * 4) + wt.size * wt.dtype.itemsize,
    )

    out = pl.pallas_call(
        _geo_affine_kernel,
        out_shape=jax.ShapeDtypeStruct((C, n_rows), jnp.float32),
        grid_spec=pltpu.PrefetchScalarGridSpec(
            num_scalar_prefetch=0,
            grid=grid,
            in_specs=[
                pl.BlockSpec((tile, L), lambda i: (i, 0)),   # x rows (lane-dense when packed)
                pl.BlockSpec((C, L), lambda i: (0, 0)),      # packed W^T (fetched once)
                pl.BlockSpec((C, 1), lambda i: (0, 0)),      # bias
                pl.BlockSpec((C, 1), lambda i: (0, 0)),      # scale
                pl.BlockSpec((C, 1), lambda i: (0, 0)),      # offset
            ],
            out_specs=pl.BlockSpec((C, tile), lambda i: (0, i)),   # lane-dense output
        ),
        compiler_params=pltpu.CompilerParams(
            dimension_semantics=("parallel",),
            vmem_limit_bytes=vmem_limit,
        ),
        cost_estimate=cost,
        # If traces show exposed DMA at step boundaries, pipeline_mode=pl.Buffered(3)
        # on the x spec is a cheap next step (only one large stream here).
    )(x_rows, wt, b, scale, off)

    # De-interleave (C, n_rows) -> (n_rows, C) -> (..., 2); ~8 B/point, could be
    # fused into the consumer if it accepts the merged layout.
    res = out.T.reshape(*lead, 2)
    return res[..., 0:1], res[..., 1:2]


def init_params(key, feature_dim, width, depth=2):
    """Layer stack: Linear(F, W), (depth-1) x Linear(W, W), Linear(W, 2)."""
    dims = [feature_dim] + [width] * depth + [2]
    params = []
    ks = jax.random.split(key, 2 * (len(dims) - 1))
    scale = 0.1
    for li in range(len(dims) - 1):
        w = scale * jax.random.normal(ks[2 * li], (dims[li], dims[li + 1]), jnp.float32)
        b = scale * jax.random.normal(ks[2 * li + 1], (1, dims[li + 1]), jnp.float32)
        params.append((w, b))
    return params


def reference_forward(feat, params):
    """Pure-JAX f32 reference matching the PyTorch semantics (unfused layers)."""
    h = feat
    for w, b in params:
        h = h @ w + b[0]
    r, dens = h[..., 0:1], h[..., 1:2]
    r = jax.nn.sigmoid(r + RADIUS_SHIFT) * (RADIUS_MAX - RADIUS_MIN) + RADIUS_MIN
    dens = jax.nn.sigmoid(dens + DENSITY_SHIFT)
    return r, dens


def matched_reference_forward(feat, params, compute_dtype=jnp.bfloat16):
    """Reference with the same numerics as the kernel (f32 fold, bf16 operands,
    f32 accumulation)."""
    w_eff, b_eff = _fold_params(params)
    lead = feat.shape[:-1]
    x = feat.reshape(-1, feat.shape[-1]).astype(compute_dtype)
    logits = jnp.dot(x, w_eff.astype(compute_dtype),
                     preferred_element_type=jnp.float32) + b_eff
    logits = logits + jnp.array([RADIUS_SHIFT, DENSITY_SHIFT], jnp.float32)
    sig = jax.nn.sigmoid(logits)
    r = sig[:, 0:1] * (RADIUS_MAX - RADIUS_MIN) + RADIUS_MIN
    dens = sig[:, 1:2]
    return r.reshape(*lead, 1), dens.reshape(*lead, 1)


if __name__ == "__main__":
    key = jax.random.PRNGKey(0)
    k_feat, k_params, k_feat2 = jax.random.split(key, 3)

    # Small shapes consistent with the module: batch=2, n_points=128,
    # feature_dim=32, cfg.width=64, cfg.depth=2.
    batch, n_points, feature_dim, width, depth = 2, 128, 32, 64, 2
    feat = jax.random.normal(k_feat, (batch, n_points, feature_dim), jnp.float32)
    params = init_params(k_params, feature_dim, width, depth)

    r, dens = geo_linear_forward(feat, params)
    jax.block_until_ready((r, dens))
    assert r.shape == (batch, n_points, 1) and dens.shape == (batch, n_points, 1)

    # Tight check vs a reference with matched numerics (folded f32 weights, bf16 dot).
    r_m, dens_m = matched_reference_forward(feat, params)
    assert jnp.allclose(r, r_m, atol=2e-5), "r mismatch vs matched reference"
    assert jnp.allclose(dens, dens_m, atol=2e-5), "dens mismatch vs matched reference"

    # Check vs the full-precision f32, layer-by-layer (PyTorch-equivalent)
    # reference; tolerance reflects the bf16 matmul operands and is well below
    # the r output range (0.001..0.015).
    r_ref, dens_ref = reference_forward(feat, params)
    assert jnp.allclose(r, r_ref, atol=2e-4), "r mismatch vs f32 reference"
    assert jnp.allclose(dens, dens_ref, atol=5e-3), "dens mismatch vs f32 reference"

    # Second call: non-multiple-of-128 point count plus a forced small tile
    # exercises the ragged (masked) edge block and the partial (k=3) packing.
    feat2 = jax.random.normal(k_feat2, (2, 375, feature_dim), jnp.float32)
    r2, dens2 = geo_linear_forward(feat2, params, tile_rows=128)
    jax.block_until_ready((r2, dens2))
    assert r2.shape == (2, 375, 1) and dens2.shape == (2, 375, 1)
    r2_ref, dens2_ref = reference_forward(feat2, params)
    assert jnp.allclose(r2, r2_ref, atol=2e-4), "r mismatch (ragged case)"
    assert jnp.allclose(dens2, dens2_ref, atol=5e-3), "dens mismatch (ragged case)"

    print("KERNEL_OK")
</pallas_src>

<mosaic_0001>
module attributes {stable_mosaic.version = 11 : i64} {
  func.func @_geo_affine_kernel(%arg0: i32, %arg1: memref<64x128xf32, #tpu.memory_space<vmem>>, %arg2: memref<8x128xbf16, #tpu.memory_space<vmem>>, %arg3: memref<8x1xf32, #tpu.memory_space<vmem>>, %arg4: memref<8x1xf32, #tpu.memory_space<vmem>>, %arg5: memref<8x1xf32, #tpu.memory_space<vmem>>, %arg6: memref<8x64xf32, #tpu.memory_space<vmem>>) attributes {dimension_semantics = [#tpu.dimension_semantics<parallel>], iteration_bounds = array<i64: 1>, scalar_prefetch = 0 : i64, scratch_operands = 0 : i64, tpu.core_type = #tpu.core_type<tc>, window_params = [{transform_indices = @transform_0, window_bounds = array<i64: 64, 128>}, {pipeline_mode = #tpu.pipeline_mode<synchronous>, transform_indices = @transform_1, window_bounds = array<i64: 8, 128>}, {pipeline_mode = #tpu.pipeline_mode<synchronous>, transform_indices = @transform_2, window_bounds = array<i64: 8, 1>}, {pipeline_mode = #tpu.pipeline_mode<synchronous>, transform_indices = @transform_3, window_bounds = array<i64: 8, 1>}, {pipeline_mode = #tpu.pipeline_mode<synchronous>, transform_indices = @transform_4, window_bounds = array<i64: 8, 1>}, {transform_indices = @transform_5, window_bounds = array<i64: 8, 64>}]} {
    %c0 = arith.constant 0 : index
    %c0_0 = arith.constant 0 : index
    %0 = vector.load %arg1[%c0, %c0_0] : memref<64x128xf32, #tpu.memory_space<vmem>>, vector<64x128xf32>
    %1 = arith.truncf %0 : vector<64x128xf32> to vector<64x128xbf16>
    %c0_1 = arith.constant 0 : index
    %c0_2 = arith.constant 0 : index
    %2 = vector.load %arg2[%c0_1, %c0_2] : memref<8x128xbf16, #tpu.memory_space<vmem>>, vector<8x128xbf16>
    %cst = arith.constant dense<0.000000e+00> : vector<8x64xf32>
    %3 = tpu.matmul %2, %1, %cst {dimension_numbers = #tpu.dot_dimension_numbers<[1], [1], [0], [0], [0, 0, 1, 0], [], []>} : vector<8x128xbf16>, vector<64x128xbf16>, vector<8x64xf32> -> vector<8x64xf32>
    %c0_3 = arith.constant 0 : index
    %c0_4 = arith.constant 0 : index
    %4 = vector.load %arg3[%c0_3, %c0_4] : memref<8x1xf32, #tpu.memory_space<vmem>>, vector<8x1xf32>
    %5 = vector.broadcast %4 : vector<8x1xf32> to vector<8x64xf32>
    %6 = arith.addf %3, %5 : vector<8x64xf32>
    %7 = arith.negf %6 : vector<8x64xf32>
    %8 = math.exp %7 : vector<8x64xf32>
    %cst_5 = arith.constant 1.000000e+00 : f32
    %9 = vector.broadcast %cst_5 : f32 to vector<8x64xf32>
    %10 = arith.addf %9, %8 : vector<8x64xf32>
    %11 = arith.divf %9, %10 : vector<8x64xf32>
    %c0_6 = arith.constant 0 : index
    %c0_7 = arith.constant 0 : index
    %12 = vector.load %arg4[%c0_6, %c0_7] : memref<8x1xf32, #tpu.memory_space<vmem>>, vector<8x1xf32>
    %13 = vector.broadcast %12 : vector<8x1xf32> to vector<8x64xf32>
    %14 = arith.mulf %11, %13 : vector<8x64xf32>
    %c0_8 = arith.constant 0 : index
    %c0_9 = arith.constant 0 : index
    %15 = vector.load %arg5[%c0_8, %c0_9] : memref<8x1xf32, #tpu.memory_space<vmem>>, vector<8x1xf32>
    %16 = vector.broadcast %15 : vector<8x1xf32> to vector<8x64xf32>
    %17 = arith.addf %14, %16 : vector<8x64xf32>
    %c0_10 = arith.constant 0 : index
    %c0_11 = arith.constant 0 : index
    %18 = vector.load %arg6[%c0_10, %c0_11] : memref<8x64xf32, #tpu.memory_space<vmem>>, vector<8x64xf32>
    tpu.vector_store %arg6[%c0_10, %c0_11], %17 {strides = array<i32>} : memref<8x64xf32, #tpu.memory_space<vmem>>, vector<8x64xf32>,
    return
  }
  func.func @transform_0(%arg0: i32) -> (i32, i32) {
    %c0_i32 = arith.constant 0 : i32
    %c0_i32_0 = arith.constant 0 : i32
    return %arg0, %c0_i32 : i32, i32
  }
  func.func @transform_1(%arg0: i32) -> (i32, i32) {
    %c0_i32 = arith.constant 0 : i32
    %c0_i32_0 = arith.constant 0 : i32
    %c0_i32_1 = arith.constant 0 : i32
    return %c0_i32, %c0_i32_0 : i32, i32
  }
  func.func @transform_2(%arg0: i32) -> (i32, i32) {
    %c0_i32 = arith.constant 0 : i32
    %c0_i32_0 = arith.constant 0 : i32
    %c0_i32_1 = arith.constant 0 : i32
    return %c0_i32, %c0_i32_0 : i32, i32
  }
  func.func @transform_3(%arg0: i32) -> (i32, i32) {
    %c0_i32 = arith.constant 0 : i32
    %c0_i32_0 = arith.constant 0 : i32
    %c0_i32_1 = arith.constant 0 : i32
    return %c0_i32, %c0_i32_0 : i32, i32
  }
  func.func @transform_4(%arg0: i32) -> (i32, i32) {
    %c0_i32 = arith.constant 0 : i32
    %c0_i32_0 = arith.constant 0 : i32
    %c0_i32_1 = arith.constant 0 : i32
    return %c0_i32, %c0_i32_0 : i32, i32
  }
  func.func @transform_5(%arg0: i32) -> (i32, i32) {
    %c0_i32 = arith.constant 0 : i32
    %c0_i32_0 = arith.constant 0 : i32
    return %c0_i32, %arg0 : i32, i32
  }
}

</mosaic_0001>

<llo_original>
// kernel: tile.14
$region0: #{tile.14}
  #allocation0 [shape = 's32[1]{0}', space=sflag, size = 0x4, scoped, tag = 'scoped memory for tile.14']
  %s0 = inlined_call_operand.vmem [shape: f32[2], index: 0, kind: input, shape index: {}]
  %s1 = inlined_call_operand.vmem [shape: f32[4,2], index: 1, kind: output, shape index: {}]
  // Predicated region
  $region2: #{tile.14} parent=0 // pred_check
    _
  $region3: #{tile.14} parent=0 // pred_check_branch
    %3 = sbr.rel (0) target = $region5
  $region4: #{tile.14} parent=0 // pred_region
    _
  $region5: #{tile.14} parent=0 // pred_fallthru
    _
  %v4 = vld [vmem:[%s0] ss:$0 sm:$0xff]
  %5 = vst [vmem:[%s1] sm:$0xf] %v4

// kernel: tile.0
$region0: #{tile.0}
  %s0 = inlined_call_operand.vmem [shape: f32[4,2], index: 0, kind: input, shape index: {}]
  %s1 = inlined_call_operand.vmem [shape: f32[8,1], index: 1, kind: output, shape index: {}]
  $region1: #{tile.0} parent=0
    #allocation0 [shape = 'u8[4096]{0}', space=vmem, size = 0x1000, scoped, tag = 'scoped mem for input reshape']
    %s3 = sshll.u32 1, 4
    %s4 = ssub.s32 %s3, 1
    %v5 = vld [vmem:[%s0] sm:%s4]
    %6 = vst [vmem:[#allocation0] sm:%s4] %v5
    %v7 = vld [vmem:[#allocation0] sm:$0xf]
    %vm8 = vcmask 7168
    %9 = vst.msk [vmem:[%s1] ss:$2 sm:$0xf] %vm8, %v7
    %v10 = vld [vmem:[#allocation0] sm:$0xf]
    %11 = vrot.lane.b32.xlu0 %v10, 127
    %v12 = vpop.permute.xlu0 %11
    %vm13 = vcmask 7168
    %s14 = scalar_lea.vmem %s1, 1
    %15 = vst.msk [vmem:[%s14] ss:$2 sm:$0xf] %vm13, %v12

// kernel: geo_linear_forward.1
$region0: #{geo_linear_forward.1}
  #allocation0 [shape = 'u32[]', space=smem, size = 0x4, offset = 0x4, fixed_abs, tag = 'smem constant byte address 0x4 - core index']
  #allocation1 [shape = 'u32[144,128]{1,0:T(1,128)}', space=vmem, size = 0x12000, scoped, tag = 'internal scratch']
  %s0 = inlined_call_operand.vmem [shape: f32[64,128], index: 0, kind: input, shape index: {}]
  %s1 = inlined_call_operand.vmem [shape: bf16[8,128], index: 1, kind: input, shape index: {}]
  %s2 = inlined_call_operand.vmem [shape: f32[8,1], index: 2, kind: input, shape index: {}]
  %s3 = inlined_call_operand.vmem [shape: f32[8,1], index: 3, kind: input, shape index: {}]
  %s4 = inlined_call_operand.vmem [shape: f32[8,1], index: 4, kind: input, shape index: {}]
  %s5 = inlined_call_operand.vmem [shape: f32[8,64], index: 5, kind: output, shape index: {}]
  %s6 = sld [smem:[#allocation0]]
  $region30: #{geo_linear_forward.1} parent=0
    _
  %s8 = ssub.s32 1, %s6
  %s9 = scalar_select 0, %s8, %s6
  // Predicated region
  $region2: #{geo_linear_forward.1} parent=0 // pred_check
    _
  $region3: #{geo_linear_forward.1} parent=0 // pred_check_branch
    %11 = sbr.rel (0) target = $region5
  $region4: #{geo_linear_forward.1} parent=0 // pred_region
    _
  $region5: #{geo_linear_forward.1} parent=0 // pred_fallthru
    _
  // Predicated region
  $region6: #{geo_linear_forward.1} parent=0 // pred_check
    _
  $region7: #{geo_linear_forward.1} parent=0 // pred_check_branch
    %13 = sbr.rel (0) target = $region9
  $region8: #{geo_linear_forward.1} parent=0 // pred_region
    _
  $region9: #{geo_linear_forward.1} parent=0 // pred_fallthru
    _
  // Predicated region
  $region10: #{geo_linear_forward.1} parent=0 // pred_check
    _
  $region11: #{geo_linear_forward.1} parent=0 // pred_check_branch
    %15 = sbr.rel (0) target = $region13
  $region12: #{geo_linear_forward.1} parent=0 // pred_region
    _
  $region13: #{geo_linear_forward.1} parent=0 // pred_fallthru
    _
  // Predicated region
  $region14: #{geo_linear_forward.1} parent=0 // pred_check
    _
  $region15: #{geo_linear_forward.1} parent=0 // pred_check_branch
    %17 = sbr.rel (0) target = $region17
  $region16: #{geo_linear_forward.1} parent=0 // pred_region
    _
  $region17: #{geo_linear_forward.1} parent=0 // pred_fallthru
    _
  // Predicated region
  $region18: #{geo_linear_forward.1} parent=0 // pred_check
    _
  $region19: #{geo_linear_forward.1} parent=0 // pred_check_branch
    %19 = sbr.rel (0) target = $region21
  $region20: #{geo_linear_forward.1} parent=0 // pred_region
    _
  $region21: #{geo_linear_forward.1} parent=0 // pred_fallthru
    _
  %v21 = vld [vmem:[%s0] sm:$0xff]
  %v22 = vld [vmem:[%s0 + $0x8] sm:$0xff]
  %v23 = vld [vmem:[%s0 + $0x10] sm:$0xff]
  %v24 = vld [vmem:[%s0 + $0x18] sm:$0xff]
  %v25 = vld [vmem:[%s0 + $0x20] sm:$0xff]
  %v26 = vld [vmem:[%s0 + $0x28] sm:$0xff]
  %v27 = vld [vmem:[%s0 + $0x30] sm:$0xff]
  %v28 = vld [vmem:[%s0 + $0x38] sm:$0xff]
  %v29 = vpack.c.bf16 %v22, %v21
  %v30 = vpack.c.bf16 %v24, %v23
  %v31 = vpack.c.bf16 %v26, %v25
  %v32 = vpack.c.bf16 %v28, %v27
  %v33 = vld [vmem:[%s1] sm:$0xf]
  %v34 = vld [vmem:[%s2] sm:$0xff]
  %36 = vset.pattern.permute.xlu0 0
  %37 = vperm.xlu0 %36, %v34
  %v38 = vpop.permute.xlu0 %37
  %40 = vmatprep.subr.bf16.mxu0 0
  %41 = vmatpush1.bf16.xpose.msra.mxu0 0
  %42 = vmatprep.subr.bf16.mxu0 0
  %43 = vmatpush1.bf16.xpose.msra.mxu0 0
  %44 = vmatprep.subr.bf16.mxu0 0
  %45 = vmatpush1.bf16.xpose.msra.mxu0 0
  %46 = vmatprep.subr.bf16.mxu0 0
  %47 = vmatpush1.bf16.xpose.msra.mxu0 0
  %48 = vmatprep.subr.bf16.mxu0 0
  %49 = vmatpush1.bf16.xpose.msra.mxu0 %v32
  %50 = vmatprep.subr.bf16.mxu0 0
  %51 = vmatpush1.bf16.xpose.msra.mxu0 %v31
  %52 = vmatprep.subr.bf16.mxu0 0
  %53 = vmatpush1.bf16.xpose.msra.mxu0 %v30
  %54 = vmatprep.subr.bf16.mxu0 0
  %55 = vmatpush1.bf16.xpose.msra.mxu0 %v29
  %56 = vmatprep.subr.bf16.mxu0 0
  %57 = vmatpush2.bf16.xpose.msra.mxu0 0
  %58 = vmatprep.subr.bf16.mxu0 0
  %59 = vmatpush2.bf16.xpose.msra.mxu0 0
  %60 = vmatprep.subr.bf16.mxu0 0
  %61 = vmatpush2.bf16.xpose.msra.mxu0 0
  %62 = vmatprep.subr.bf16.mxu0 0
  %63 = vmatpush2.bf16.xpose.msra.mxu0 0
  %64 = vmatprep.subr.bf16.mxu0 0
  %65 = vmatpush2.bf16.xpose.msra.mxu0 0
  %66 = vmatprep.subr.bf16.mxu0 0
  %67 = vmatpush2.bf16.xpose.msra.mxu0 0
  %68 = vmatprep.subr.bf16.mxu0 0
  %69 = vmatpush2.bf16.xpose.msra.mxu0 0
  %70 = vmatprep.subr.bf16.mxu0 0
  %71 = vmatpush2.bf16.xpose.msra.mxu0 0
  %72 = vmatprep.mubr.bf16.mxu0 0
  %73 = vmatmul.mubr.bf16.gmra.mxu0 %v33
  %v74 = vpop.f32.mrf.mxu0
  %v75 = vadd.f32 %v38, %v74
  %v76 = vpop.f32.mrf.mxu0
  %v77 = vpop.f32.mrf.mxu0
  %v78 = vpop.f32.mrf.mxu0
  %79 = vdwg.mxu0
  %v80 = vxor.u32 %v75, 2147483648
  %v81 = vmul.f32 %v80, 1.442695
  %v82 = vpow.pop %v81
  %v83 = vadd.f32 %v82, 1.0
  %v84 = vrcp.pop %v83
  %v85 = vmul.f32 1.0, %v84
  %v86 = vld [vmem:[%s3] sm:$0xff]
  %88 = vset.pattern.permute.xlu0 0
  %89 = vperm.xlu0 %88, %v86
  %v90 = vpop.permute.xlu0 %89
  %v92 = vmul.f32 %v85, %v90
  %v93 = vld [vmem:[%s4] sm:$0xff]
  %95 = vset.pattern.permute.xlu0 0
  %96 = vperm.xlu0 %95, %v93
  %v97 = vpop.permute.xlu0 %96
  %v99 = vadd.f32 %v92, %v97
  %vm100 = vcmask 523264
  %101 = vst.msk [vmem:[%s5] sm:$0xff] %vm100, %v99
  // Predicated region
  $region22: #{geo_linear_forward.1} parent=0 // pred_check
    _
  $region23: #{geo_linear_forward.1} parent=0 // pred_check_branch
    %103 = sbr.rel (0) target = $region25
  $region24: #{geo_linear_forward.1} parent=0 // pred_region
    _
  $region25: #{geo_linear_forward.1} parent=0 // pred_fallthru
    _
  // Predicated region
  $region26: #{geo_linear_forward.1} parent=0 // pred_check
    _
  $region27: #{geo_linear_forward.1} parent=0 // pred_check_branch
    %105 = sbr.rel (0) target = $region29
  $region28: #{geo_linear_forward.1} parent=0 // pred_region
    _
  $region29: #{geo_linear_forward.1} parent=0 // pred_fallthru
    _

</llo_original>
